<compile_context>
chip_gen: v7x
topology: tpu7x:2x2x1
jax: 0.10.0
libtpu: 0.0.40
codegen_flags: <defaults>
</compile_context>

<pallas_src>
import functools
import math

import jax
import jax.numpy as jnp
from jax.experimental import pallas as pl
from jax.experimental.pallas import tpu as pltpu


def _round_up(x, m):
    return (x + m - 1) // m * m


# ----------------------------------------------------------------------------
# Fused 3-layer NNConv kernel.  One grid step == one layer.
# ----------------------------------------------------------------------------
def _fused_gnn_kernel(a_ref, x_ref, w_ref, b_ref, o_ref, h_ref, *, num_layers):
    layer = pl.program_id(0)

    # Layer 0: seed the resident activation scratch with the (padded) input.
    @pl.when(layer == 0)
    def _():
        h_ref[...] = x_ref[...]

    a = a_ref[...]                                   # [Np, Np]  bf16 (VMEM-resident)
    h = h_ref[...]                                   # [Np, Cp]  bf16 (VMEM scratch)

    # Message aggregation on the MXU, f32 accumulation.
    agg = jnp.dot(a, h, preferred_element_type=jnp.float32)            # [Np, Cp] f32

    # Fused edge + root transform: [agg | h] @ [[W_edge],[W_root]] + b
    cat = jnp.concatenate([agg.astype(h.dtype), h], axis=-1)           # [Np, 2Cp] bf16
    out = jnp.dot(cat, w_ref[...], preferred_element_type=jnp.float32) # [Np, Cp] f32
    out = out + b_ref[...]                                             # bias (broadcast)

    # Hidden state for the next layer always goes through ReLU (layers 1 & 2);
    # the final-layer output below is stored pre-ReLU, matching the reference.
    h_ref[...] = jnp.maximum(out, 0.0).astype(h_ref.dtype)

    @pl.when(layer == num_layers - 1)
    def _():
        o_ref[...] = out.astype(o_ref.dtype)


# ----------------------------------------------------------------------------
# Parameter init (deterministic, mirrors weights_init):
#   - weights with dim > 1 : xavier_uniform
#   - weights with dim == 1: zeros
# ----------------------------------------------------------------------------
def _xavier_uniform(key, shape, fan_in, fan_out):
    bound = math.sqrt(6.0 / (fan_in + fan_out))
    return jax.random.uniform(key, shape, jnp.float32, -bound, bound)


def init_gnn_params(key, in_channels, out_channels, hidden=128):
    dims = [(in_channels, hidden), (hidden, hidden), (hidden, out_channels)]
    params = []
    for (cin, cout) in dims:
        key, k_edge, k_root = jax.random.split(key, 3)
        # Linear(1, cin*cout).weight has shape (cin*cout, 1); xavier bound uses
        # fan_in=1, fan_out=cin*cout.  Reshaped row-major to (cin, cout).
        w_edge = _xavier_uniform(k_edge, (cin, cout), 1, cin * cout)
        # NNConv root weight (dim 2 -> xavier), NNConv bias (dim 1 -> zeros).
        w_root = _xavier_uniform(k_root, (cin, cout), cin, cout)
        bias = jnp.zeros((1, cout), jnp.float32)
        # The edge-nn Linear bias is also zero-initialized -> absorbed exactly.
        params.append((w_edge, w_root, bias))
    return params


def _pack_params(params, c_pad):
    """Pack per-layer (W_edge, W_root, bias) into lane-dense, layer-stacked
    tensors:  W_all [L, 2*Cp, Cp] (bf16),  b_all [L, 1, Cp] (f32)."""
    w_blocks, b_blocks = [], []
    for (w_edge, w_root, bias) in params:
        cin, cout = w_edge.shape
        wcat = jnp.zeros((2 * c_pad, c_pad), jnp.float32)
        wcat = wcat.at[:cin, :cout].set(w_edge)                # multiplies A @ h
        wcat = wcat.at[c_pad:c_pad + cin, :cout].set(w_root)   # multiplies h
        w_blocks.append(wcat)
        b_blocks.append(jnp.zeros((1, c_pad), jnp.float32).at[:, :cout].set(bias))
    return jnp.stack(w_blocks).astype(jnp.bfloat16), jnp.stack(b_blocks)


# ----------------------------------------------------------------------------
# Full GNNEmbeds forward (single graph; batching == block-diagonal adjacency)
# ----------------------------------------------------------------------------
def gnn_embeds_forward(params, x, edge_index, edge_attr):
    n, cin = x.shape
    hidden = params[0][0].shape[1]
    out_channels = params[-1][0].shape[1]
    num_layers = len(params)

    # Pad nodes and channels to 128 multiples: lane-dense matmuls and stores.
    n_pad = _round_up(n, 128)
    c_pad = _round_up(max(cin, hidden, out_channels), 128)

    # Densify edge list: A[dst, src] += edge_attr (aggr='add', source->target flow).
    src, dst = edge_index[0], edge_index[1]
    adj = jnp.zeros((n_pad, n_pad), jnp.float32).at[dst, src].add(edge_attr[:, 0])
    adj = adj.astype(jnp.bfloat16)

    x_pad = (jnp.zeros((n_pad, c_pad), jnp.bfloat16)
             .at[:n, :cin].set(x.astype(jnp.bfloat16)))

    w_all, b_all = _pack_params(params, c_pad)

    # VMEM budget / cost hints.
    a_bytes = n_pad * n_pad * 2
    x_bytes = n_pad * c_pad * 2
    w_bytes = 2 * c_pad * c_pad * 2
    b_bytes = c_pad * 4
    o_bytes = n_pad * c_pad * 4
    h_bytes = n_pad * c_pad * 2
    vmem_est = 2 * (a_bytes + x_bytes + w_bytes + b_bytes + o_bytes) + h_bytes + (4 << 20)
    vmem_limit = int(min(max(vmem_est, 16 << 20), 48 << 20))

    flops = num_layers * (2 * n_pad * n_pad * c_pad + 2 * n_pad * (2 * c_pad) * c_pad)
    bytes_accessed = a_bytes + x_bytes + num_layers * (w_bytes + b_bytes) + o_bytes

    out = pl.pallas_call(
        functools.partial(_fused_gnn_kernel, num_layers=num_layers),
        out_shape=jax.ShapeDtypeStruct((n_pad, c_pad), jnp.float32),
        grid_spec=pltpu.PrefetchScalarGridSpec(
            num_scalar_prefetch=0,
            grid=(num_layers,),
            in_specs=[
                # A and x: constant block index -> fetched once, VMEM-resident.
                pl.BlockSpec((n_pad, n_pad), lambda l: (0, 0)),
                pl.BlockSpec((n_pad, c_pad), lambda l: (0, 0)),
                # Per-layer weights / bias: pipelined in by the layer grid axis.
                pl.BlockSpec((None, 2 * c_pad, c_pad), lambda l: (l, 0, 0)),
                pl.BlockSpec((None, 1, c_pad), lambda l: (l, 0, 0)),
            ],
            out_specs=pl.BlockSpec((n_pad, c_pad), lambda l: (0, 0)),
            scratch_shapes=[pltpu.VMEM((n_pad, c_pad), jnp.bfloat16)],
        ),
        compiler_params=pltpu.CompilerParams(
            dimension_semantics=("arbitrary",),   # layer axis is sequential
            vmem_limit_bytes=vmem_limit,
        ),
        cost_estimate=pl.CostEstimate(
            flops=flops, transcendentals=0, bytes_accessed=bytes_accessed),
    )(adj, x_pad, w_all, b_all)

    return out[:n, :out_channels]


# ----------------------------------------------------------------------------
# Pure-JAX f32 reference (for a loose-tolerance sanity check of the bf16 kernel)
# ----------------------------------------------------------------------------
def gnn_reference(params, x, edge_index, edge_attr):
    n = x.shape[0]
    adj = (jnp.zeros((n, n), jnp.float32)
           .at[edge_index[1], edge_index[0]].add(edge_attr[:, 0]))
    h = x
    for i, (w_edge, w_root, bias) in enumerate(params):
        h = (adj @ h) @ w_edge + h @ w_root + bias
        if i < len(params) - 1:
            h = jnp.maximum(h, 0.0)
    return h


if __name__ == "__main__":
    N = 16            # number of nodes
    E = 32            # number of edges
    IN_CHANNELS = 8
    OUT_CHANNELS = 32

    key = jax.random.PRNGKey(0)
    k_x, k_src, k_dst, k_attr, k_params = jax.random.split(key, 5)

    x = jax.random.normal(k_x, (N, IN_CHANNELS), jnp.float32)
    edge_index = jnp.stack([
        jax.random.randint(k_src, (E,), 0, N),
        jax.random.randint(k_dst, (E,), 0, N),
    ]).astype(jnp.int32)                              # [2, E]
    edge_attr = jax.random.uniform(k_attr, (E, 1), jnp.float32)

    params = init_gnn_params(k_params, IN_CHANNELS, OUT_CHANNELS)

    out = gnn_embeds_forward(params, x, edge_index, edge_attr)
    jax.block_until_ready(out)
    assert out.shape == (N, OUT_CHANNELS)

    ref = gnn_reference(params, x, edge_index, edge_attr)
    # bf16 inputs / bf16 inter-layer activations with f32 accumulation -> small drift.
    assert bool(jnp.allclose(out, ref, rtol=2e-2, atol=2e-2)), "kernel/reference mismatch"

    print("KERNEL_OK")
</pallas_src>

<mosaic_0001>
module attributes {stable_mosaic.version = 11 : i64} {
  func.func @_fused_gnn_kernel(%arg0: i32, %arg1: memref<128x128xbf16, #tpu.memory_space<vmem>>, %arg2: memref<128x128xbf16, #tpu.memory_space<vmem>>, %arg3: memref<1x256x128xbf16, #tpu.memory_space<vmem>>, %arg4: memref<1x1x128xf32, #tpu.memory_space<vmem>>, %arg5: memref<128x128xf32, #tpu.memory_space<vmem>>, %arg6: memref<128x128xbf16, #tpu.memory_space<vmem>>) attributes {dimension_semantics = [#tpu.dimension_semantics<arbitrary>], iteration_bounds = array<i64: 3>, scalar_prefetch = 0 : i64, scratch_operands = 1 : i64, tpu.core_type = #tpu.core_type<tc>, window_params = [{pipeline_mode = #tpu.pipeline_mode<synchronous>, transform_indices = @transform_0, window_bounds = array<i64: 128, 128>}, {pipeline_mode = #tpu.pipeline_mode<synchronous>, transform_indices = @transform_1, window_bounds = array<i64: 128, 128>}, {transform_indices = @transform_2, window_bounds = array<i64: 1, 256, 128>}, {transform_indices = @transform_3, window_bounds = array<i64: 1, 1, 128>}, {pipeline_mode = #tpu.pipeline_mode<synchronous>, transform_indices = @transform_4, window_bounds = array<i64: 128, 128>}]} {
    %c0_i32 = arith.constant 0 : i32
    %0 = arith.cmpi eq, %arg0, %c0_i32 : i32
    %1 = arith.extui %0 : i1 to i32
    %c0_i32_0 = arith.constant 0 : i32
    %2 = arith.cmpi ne, %1, %c0_i32_0 : i32
    scf.if %2 {
      %c0_15 = arith.constant 0 : index
      %c0_16 = arith.constant 0 : index
      %22 = vector.load %arg2[%c0_15, %c0_16] : memref<128x128xbf16, #tpu.memory_space<vmem>>, vector<128x128xbf16>
      %c0_17 = arith.constant 0 : index
      %c0_18 = arith.constant 0 : index
      %23 = vector.load %arg6[%c0_17, %c0_18] : memref<128x128xbf16, #tpu.memory_space<vmem>>, vector<128x128xbf16>
      tpu.vector_store %arg6[%c0_17, %c0_18], %22 {strides = array<i32>} : memref<128x128xbf16, #tpu.memory_space<vmem>>, vector<128x128xbf16>,
    } else {
    }
    %c0 = arith.constant 0 : index
    %c0_1 = arith.constant 0 : index
    %3 = vector.load %arg1[%c0, %c0_1] : memref<128x128xbf16, #tpu.memory_space<vmem>>, vector<128x128xbf16>
    %c0_2 = arith.constant 0 : index
    %c0_3 = arith.constant 0 : index
    %4 = vector.load %arg6[%c0_2, %c0_3] : memref<128x128xbf16, #tpu.memory_space<vmem>>, vector<128x128xbf16>
    %cst = arith.constant dense<0.000000e+00> : vector<128x128xf32>
    %5 = tpu.matmul %3, %4, %cst {dimension_numbers = #tpu.dot_dimension_numbers<[1], [0], [0], [1], [0, 0, 1, 1], [], []>} : vector<128x128xbf16>, vector<128x128xbf16>, vector<128x128xf32> -> vector<128x128xf32>
    %6 = arith.truncf %5 : vector<128x128xf32> to vector<128x128xbf16>
    %7 = tpu.concatenate %6, %4 in 1 : vector<128x128xbf16>, vector<128x128xbf16> -> vector<128x256xbf16>
    %c0_4 = arith.constant 0 : index
    %c0_5 = arith.constant 0 : index
    %c0_6 = arith.constant 0 : index
    %8 = vector.load %arg3[%c0_4, %c0_5, %c0_6] : memref<1x256x128xbf16, #tpu.memory_space<vmem>>, vector<1x256x128xbf16>
    %9 = vector.shape_cast %8 : vector<1x256x128xbf16> to vector<256x128xbf16>
    %cst_7 = arith.constant dense<0.000000e+00> : vector<128x128xf32>
    %10 = tpu.matmul %7, %9, %cst_7 {dimension_numbers = #tpu.dot_dimension_numbers<[1], [0], [0], [1], [0, 0, 1, 1], [], []>} : vector<128x256xbf16>, vector<256x128xbf16>, vector<128x128xf32> -> vector<128x128xf32>
    %c0_8 = arith.constant 0 : index
    %c0_9 = arith.constant 0 : index
    %c0_10 = arith.constant 0 : index
    %11 = vector.load %arg4[%c0_8, %c0_9, %c0_10] : memref<1x1x128xf32, #tpu.memory_space<vmem>>, vector<1x1x128xf32>
    %12 = vector.shape_cast %11 : vector<1x1x128xf32> to vector<1x128xf32>
    %13 = vector.broadcast %12 : vector<1x128xf32> to vector<128x128xf32>
    %14 = arith.addf %10, %13 : vector<128x128xf32>
    %cst_11 = arith.constant 0.000000e+00 : f32
    %15 = vector.broadcast %cst_11 : f32 to vector<128x128xf32>
    %16 = arith.maximumf %14, %15 : vector<128x128xf32>
    %17 = arith.truncf %16 : vector<128x128xf32> to vector<128x128xbf16>
    %c0_12 = arith.constant 0 : index
    %c0_13 = arith.constant 0 : index
    %18 = vector.load %arg6[%c0_12, %c0_13] : memref<128x128xbf16, #tpu.memory_space<vmem>>, vector<128x128xbf16>
    tpu.vector_store %arg6[%c0_12, %c0_13], %17 {strides = array<i32>} : memref<128x128xbf16, #tpu.memory_space<vmem>>, vector<128x128xbf16>,
    %c2_i32 = arith.constant 2 : i32
    %19 = arith.cmpi eq, %arg0, %c2_i32 : i32
    %20 = arith.extui %19 : i1 to i32
    %c0_i32_14 = arith.constant 0 : i32
    %21 = arith.cmpi ne, %20, %c0_i32_14 : i32
    scf.if %21 {
      %c0_15 = arith.constant 0 : index
      %c0_16 = arith.constant 0 : index
      %22 = vector.load %arg5[%c0_15, %c0_16] : memref<128x128xf32, #tpu.memory_space<vmem>>, vector<128x128xf32>
      tpu.vector_store %arg5[%c0_15, %c0_16], %14 {strides = array<i32>} : memref<128x128xf32, #tpu.memory_space<vmem>>, vector<128x128xf32>,
    } else {
    }
    return
  }
  func.func @transform_0(%arg0: i32) -> (i32, i32) {
    %c0_i32 = arith.constant 0 : i32
    %c0_i32_0 = arith.constant 0 : i32
    %c0_i32_1 = arith.constant 0 : i32
    return %c0_i32, %c0_i32_0 : i32, i32
  }
  func.func @transform_1(%arg0: i32) -> (i32, i32) {
    %c0_i32 = arith.constant 0 : i32
    %c0_i32_0 = arith.constant 0 : i32
    %c0_i32_1 = arith.constant 0 : i32
    return %c0_i32, %c0_i32_0 : i32, i32
  }
  func.func @transform_2(%arg0: i32) -> (i32, i32, i32) {
    %c0_i32 = arith.constant 0 : i32
    %c0_i32_0 = arith.constant 0 : i32
    %c0_i32_1 = arith.constant 0 : i32
    return %arg0, %c0_i32, %c0_i32_0 : i32, i32, i32
  }
  func.func @transform_3(%arg0: i32) -> (i32, i32, i32) {
    %c0_i32 = arith.constant 0 : i32
    %c0_i32_0 = arith.constant 0 : i32
    %c0_i32_1 = arith.constant 0 : i32
    return %arg0, %c0_i32, %c0_i32_0 : i32, i32, i32
  }
  func.func @transform_4(%arg0: i32) -> (i32, i32) {
    %c0_i32 = arith.constant 0 : i32
    %c0_i32_0 = arith.constant 0 : i32
    %c0_i32_1 = arith.constant 0 : i32
    return %c0_i32, %c0_i32_0 : i32, i32
  }
}

</mosaic_0001>

<llo_original>
// kernel: tpu_custom_call.1
$region0: #{tpu_custom_call.1}
  #allocation0 [shape = 'u32[]', space=smem, size = 0x4, offset = 0x4, fixed_abs, tag = 'smem constant byte address 0x4 - core index']
  #allocation1 [shape = 'u32[144,128]{1,0:T(1,128)}', space=vmem, size = 0x12000, scoped, tag = 'internal scratch']
  #allocation2 [shape = 'bf16[128,128]{1,0:T(16,128)(2,1)}', space=vmem, size = 0x8000, scoped, tag = 'scratch operand']
  %s0 = inlined_call_operand.hbm [shape: bf16[128,128], index: 0, kind: input, shape index: {}]
  %s1 = inlined_call_operand.hbm [shape: bf16[128,128], index: 1, kind: input, shape index: {}]
  %s2 = inlined_call_operand.hbm [shape: bf16[3,256,128], index: 2, kind: input, shape index: {}]
  %s3 = inlined_call_operand.vmem [shape: f32[3,1,128], index: 3, kind: input, shape index: {}]
  %s4 = inlined_call_operand.hbm [shape: f32[128,128], index: 4, kind: output, shape index: {}]
  %s5 = sld [smem:[#allocation0]]
  $region69: #{tpu_custom_call.1} parent=0
    _
  %s7 = ssub.s32 1, %s5
  %s8 = scalar_select 0, %s7, %s5
  $region1: #{tpu_custom_call.1} parent=0
    #allocation3 [shape = 'u8[32768]{0}', space=vmem, size = 0x8000, scoped, tag = 'input window, operand 0, single buffered']
    #allocation4 [shape = 's32[2]{0}', space=sflag, size = 0x8, scoped, tag = 'scoped memory for tpu_custom_call.1']
    #allocation5 [shape = 's32[2]{0}', space=sflag, size = 0x8, scoped, tag = 'scoped memory for tpu_custom_call.1']
    #allocation6 [shape = 'u8[32768]{0}', space=vmem, size = 0x8000, scoped, tag = 'input window, operand 1, single buffered']
    #allocation7 [shape = 's32[1]{0}', space=sflag, size = 0x4, scoped, tag = 'scoped memory for tpu_custom_call.1']
    #allocation8 [shape = 'u8[131072]{0}', space=vmem, size = 0x20000, scoped, tag = 'input window, operand 2']
    #allocation9 [shape = 'u8[65536]{0}', space=vmem, size = 0x10000, scoped, tag = 'output window, operand 0, single buffered']
    %9 = vsyncpa [#allocation4], 0
    %10 = vsyncpa [#allocation7], 0
    %11 = vsyncpa [#allocation5], 0
    loop: start=0, step=1, limit=5
    $region2: #{tpu_custom_call.1} parent=1 // loop_pre_header
      _
    $region3: #{tpu_custom_call.1} parent=1 // loop_header
      %s13 = sphi 0, %s17
      %p14 = scmp.ge.s32.totalorder %s13, 5
      %s21 = sphi 0, %s21
      %s23 = sphi 0, %s21
      %s24 = sphi 0, %s23
      %s38 = sphi 0, %s24
      %s42 = sphi 0, %s42
      %s44 = sphi 0, %s42
      %s45 = sphi 0, %s44
      %s59 = sphi 0, %s45
      %s65 = sphi 0, %s67
      %s68 = sphi 0, %s65
      %s69 = sphi 0, %s68
      %s85 = sphi 0, %s69
      %s91 = sphi 0, %s93
      %s94 = sphi 0, %s91
      %s95 = sphi 0, %s94
      %s111 = sphi 0, %s95
      %s115 = sphi 0, %s115
      %s117 = sphi 0, %s115
      %s118 = sphi 0, %s117
      %s132 = sphi 0, %s118
    $region4: #{tpu_custom_call.1} parent=1 // loop_header_branch
      %16 = sbr.rel (%p14) target = $region8
    $region5: #{tpu_custom_call.1} parent=1 // loop_body
      %s18 = ssub.s32 %s13, 1
      %s19 = ssub.s32 %s13, 2
      %s20 = sadd.s32 %s13, 1
      %s22 = sadd.s32 %s21, 1
      %p25 = scmp.eq.s32.totalorder %s13, 2
      %p26 = scmp.ne.s32.totalorder %s21, %s23
      %p27 = scmp.eq.s32.totalorder %s13, 0
      %p28 = por %p26, %p27
      %p29 = scmp.ne.s32.totalorder %s21, %s23
      %p30 = scmp.eq.s32.totalorder %s18, 2
      %p31 = por %p29, %p30
      %p32 = scmp.ne.s32.totalorder %s23, %s24
      %p33 = scmp.eq.s32.totalorder %s18, 0
      %p34 = por %p32, %p33
      %p35 = scmp.ne.s32.totalorder %s23, %s24
      %p36 = scmp.eq.s32.totalorder %s19, 2
      %p37 = por %p35, %p36
      %p39 = scmp.ne.s32.totalorder %s24, %s38
      %p40 = scmp.eq.s32.totalorder %s19, 0
      %p41 = por %p39, %p40
      %s43 = sadd.s32 %s42, 1
      %p46 = scmp.eq.s32.totalorder %s13, 2
      %p47 = scmp.ne.s32.totalorder %s42, %s44
      %p48 = scmp.eq.s32.totalorder %s13, 0
      %p49 = por %p47, %p48
      %p50 = scmp.ne.s32.totalorder %s42, %s44
      %p51 = scmp.eq.s32.totalorder %s18, 2
      %p52 = por %p50, %p51
      %p53 = scmp.ne.s32.totalorder %s44, %s45
      %p54 = scmp.eq.s32.totalorder %s18, 0
      %p55 = por %p53, %p54
      %p56 = scmp.ne.s32.totalorder %s44, %s45
      %p57 = scmp.eq.s32.totalorder %s19, 2
      %p58 = por %p56, %p57
      %p60 = scmp.ne.s32.totalorder %s45, %s59
      %p61 = scmp.eq.s32.totalorder %s19, 0
      %p62 = por %p60, %p61
      %s63 = ssub.s32 %s13, %s20
      %p64 = scmp.eq.s32.totalorder %s63, 0
      %s66 = sadd.s32 %s65, 1
      %s67 = scalar_select %p64, %s65, %s66
      %p70 = pneg %p64
      %p71 = scmp.eq.s32.totalorder %s13, 2
      %p72 = por %p70, %p71
      %p73 = scmp.ne.s32.totalorder %s65, %s68
      %p74 = scmp.eq.s32.totalorder %s13, 0
      %p75 = por %p73, %p74
      %p76 = scmp.ne.s32.totalorder %s65, %s68
      %p77 = scmp.eq.s32.totalorder %s18, 2
      %p78 = por %p76, %p77
      %p79 = scmp.ne.s32.totalorder %s68, %s69
      %p80 = scmp.eq.s32.totalorder %s18, 0
      %p81 = por %p79, %p80
      %p82 = scmp.ne.s32.totalorder %s68, %s69
      %p83 = scmp.eq.s32.totalorder %s19, 2
      %p84 = por %p82, %p83
      %p86 = scmp.ne.s32.totalorder %s69, %s85
      %p87 = scmp.eq.s32.totalorder %s19, 0
      %p88 = por %p86, %p87
      %s89 = ssub.s32 %s13, %s20
      %p90 = scmp.eq.s32.totalorder %s89, 0
      %s92 = sadd.s32 %s91, 1
      %s93 = scalar_select %p90, %s91, %s92
      %p96 = pneg %p90
      %p97 = scmp.eq.s32.totalorder %s13, 2
      %p98 = por %p96, %p97
      %p99 = scmp.ne.s32.totalorder %s91, %s94
      %p100 = scmp.eq.s32.totalorder %s13, 0
      %p101 = por %p99, %p100
      %p102 = scmp.ne.s32.totalorder %s91, %s94
      %p103 = scmp.eq.s32.totalorder %s18, 2
      %p104 = por %p102, %p103
      %p105 = scmp.ne.s32.totalorder %s94, %s95
      %p106 = scmp.eq.s32.totalorder %s18, 0
      %p107 = por %p105, %p106
      %p108 = scmp.ne.s32.totalorder %s94, %s95
      %p109 = scmp.eq.s32.totalorder %s19, 2
      %p110 = por %p108, %p109
      %p112 = scmp.ne.s32.totalorder %s95, %s111
      %p113 = scmp.eq.s32.totalorder %s19, 0
      %p114 = por %p112, %p113
      %s116 = sadd.s32 %s115, 1
      %p119 = scmp.eq.s32.totalorder %s13, 2
      %p120 = scmp.ne.s32.totalorder %s115, %s117
      %p121 = scmp.eq.s32.totalorder %s13, 0
      %p122 = por %p120, %p121
      %p123 = scmp.ne.s32.totalorder %s115, %s117
      %p124 = scmp.eq.s32.totalorder %s18, 2
      %p125 = por %p123, %p124
      %p126 = scmp.ne.s32.totalorder %s117, %s118
      %p127 = scmp.eq.s32.totalorder %s18, 0
      %p128 = por %p126, %p127
      %p129 = scmp.ne.s32.totalorder %s117, %s118
      %p130 = scmp.eq.s32.totalorder %s19, 2
      %p131 = por %p129, %p130
      %p133 = scmp.ne.s32.totalorder %s118, %s132
      %p134 = scmp.eq.s32.totalorder %s19, 0
      %p135 = por %p133, %p134
      %p136 = scmp.le.s32.totalorder 1, %s13
      %p137 = scmp.lt.s32.totalorder %s13, 4
      %p138 = pnand %p136, %p137
      %p139 = pneg %p138
      // Predicated region
      $region9: #{tpu_custom_call.1} parent=5 // pred_check
        _
      $region10: #{tpu_custom_call.1} parent=5 // pred_check_branch
        %141 = sbr.rel (%p138) target = $region12
      $region11: #{tpu_custom_call.1} parent=5 // pred_region
        %s142 = ssub.s32 %s13, 1
        // Predicated region
        $region13: #{tpu_custom_call.1} parent=11 // pred_check
          %p143 = pneg %p34
        $region14: #{tpu_custom_call.1} parent=11 // pred_check_branch
          %145 = sbr.rel (%p143) target = $region16
        $region15: #{tpu_custom_call.1} parent=11 // pred_region
          %s147 = ssub.s32 1024, 1024
          %148 = vsyncadd [#allocation4], %s147
          %s149 = sshll.u32 [#allocation3], 4
          %s150 = int_to_ptr.vmem [resolvable:$true] %s149
          %155 = dma.hbm_to_vmem [thread:$0]  %s0, 1024, %s150, [#allocation4], 64, 64, 4
        $region16: #{tpu_custom_call.1} parent=11 // pred_fallthru
          _
        // Predicated region
        $region17: #{tpu_custom_call.1} parent=11 // pred_check
          %p156 = pneg %p55
        $region18: #{tpu_custom_call.1} parent=11 // pred_check_branch
          %158 = sbr.rel (%p156) target = $region20
        $region19: #{tpu_custom_call.1} parent=11 // pred_region
          %s160 = ssub.s32 1024, 1024
          %161 = vsyncadd [#allocation7], %s160
          %s162 = sshll.u32 [#allocation6], 4
          %s163 = int_to_ptr.vmem [resolvable:$true] %s162
          %168 = dma.hbm_to_vmem [thread:$0]  %s1, 1024, %s163, [#allocation7], 64, 64, 4
        $region20: #{tpu_custom_call.1} parent=11 // pred_fallthru
          _
      $region12: #{tpu_custom_call.1} parent=5 // pred_fallthru
        _
      %p169 = scmp.lt.s32.totalorder %s13, 3
      // Predicated region
      $region21: #{tpu_custom_call.1} parent=5 // pred_check
        %p170 = pneg %p169
      $region22: #{tpu_custom_call.1} parent=5 // pred_check_branch
        %172 = sbr.rel (%p170) target = $region24
      $region23: #{tpu_custom_call.1} parent=5 // pred_region
        // Predicated region
        $region25: #{tpu_custom_call.1} parent=23 // pred_check
          %p173 = pneg %p75
        $region26: #{tpu_custom_call.1} parent=23 // pred_check_branch
          %175 = sbr.rel (%p173) target = $region28
        $region27: #{tpu_custom_call.1} parent=23 // pred_region
          %s176 = sand.u32 %s13, 1
          %s177 = scalar_lea.sflag [#allocation4], %s176
          %s178 = sand.u32 %s65, 1
          %s179 = smul.addr %s178, 128
          %s180 = scalar_lea.vmem [#allocation8], %s179
          %s182 = ssub.s32 2048, 2048
          %183 = vsyncadd %s177, %s182
          %s184 = smul.addr %s13, 32
          %s185 = smul.addr %s184, 64
          %s186 = scalar_lea.hbm %s2, %s185
          %s187 = sshll.u32 %s180, 4
          %s188 = int_to_ptr.vmem [resolvable:$true] %s187
          %193 = dma.hbm_to_vmem [thread:$0]  %s186, 2048, %s188, %s177, 64, 64, 4
        $region28: #{tpu_custom_call.1} parent=23 // pred_fallthru
          _
        // Predicated region
        $region29: #{tpu_custom_call.1} parent=23 // pred_check
          %p194 = pneg %p101
        $region30: #{tpu_custom_call.1} parent=23 // pred_check_branch
          %196 = sbr.rel (%p194) target = $region32
        $region31: #{tpu_custom_call.1} parent=23 // pred_region
          %p197 = scmp.lt.s32.totalorder %s13, 2
          %s198 = scalar_select %p197, %s13, 2
          %s199 = scalar_lea.vmem %s3, %s198
        $region32: #{tpu_custom_call.1} parent=23 // pred_fallthru
          _
      $region24: #{tpu_custom_call.1} parent=5 // pred_fallthru
        _
      %p200 = scmp.le.s32.totalorder 1, %s13
      %p201 = scmp.lt.s32.totalorder %s13, 4
      %p202 = pnand %p200, %p201
      %p203 = pneg %p202
      // Predicated region
      $region33: #{tpu_custom_call.1} parent=5 // pred_check
        _
      $region34: #{tpu_custom_call.1} parent=5 // pred_check_branch
        %205 = sbr.rel (%p202) target = $region36
      $region35: #{tpu_custom_call.1} parent=5 // pred_region
        %s206 = ssub.s32 %s13, 1
        // Predicated region
        $region37: #{tpu_custom_call.1} parent=35 // pred_check
          %p207 = pneg %p34
        $region38: #{tpu_custom_call.1} parent=35 // pred_check_branch
          %209 = sbr.rel (%p207) target = $region40
        $region39: #{tpu_custom_call.1} parent=35 // pred_region
          %210 = dma.done [#allocation4], 1024
        $region40: #{tpu_custom_call.1} parent=35 // pred_fallthru
          _
        // Predicated region
        $region41: #{tpu_custom_call.1} parent=35 // pred_check
          %p211 = pneg %p55
        $region42: #{tpu_custom_call.1} parent=35 // pred_check_branch
          %213 = sbr.rel (%p211) target = $region44
        $region43: #{tpu_custom_call.1} parent=35 // pred_region
          %214 = dma.done [#allocation7], 1024
        $region44: #{tpu_custom_call.1} parent=35 // pred_fallthru
          _
        %s215 = sand.u32 %s18, 1
        %s216 = scalar_lea.sflag [#allocation4], %s215
        %s217 = sand.u32 %s68, 1
        %s218 = smul.addr %s217, 128
        %s219 = scalar_lea.vmem [#allocation8], %s218
        // Predicated region
        $region45: #{tpu_custom_call.1} parent=35 // pred_check
          %p220 = pneg %p81
        $region46: #{tpu_custom_call.1} parent=35 // pred_check_branch
          %222 = sbr.rel (%p220) target = $region48
        $region47: #{tpu_custom_call.1} parent=35 // pred_region
          %223 = dma.done %s216, 2048
        $region48: #{tpu_custom_call.1} parent=35 // pred_fallthru
          _
        %p224 = pneg %p34
        %p225 = pneg %p31
        %p226 = pneg %p55
        %p227 = pneg %p52
        %s228 = sand.u32 %s18, 1
        %s229 = scalar_lea.sflag [#allocation4], %s228
        %s230 = sand.u32 %s68, 1
        %s231 = smul.addr %s230, 128
        %s232 = scalar_lea.vmem [#allocation8], %s231
        %p233 = pneg %p81
        %p234 = pneg %p78
        %p235 = scmp.lt.s32.totalorder %s18, 2
        %s236 = scalar_select %p235, %s18, 2
        %s237 = scalar_lea.vmem %s3, %s236
        %p238 = pneg %p107
        %p239 = pneg %p104
        %p240 = pneg %p128
        %p241 = pneg %p125
        %p242 = scmp.lt.s32.totalorder %s18, 2
        %s243 = scalar_select %p242, %s18, 2
        %s244 = scalar_lea.vmem %s3, %s243
        %p246 = scmp.eq.s32.totalorder %s18, 0
        // Predicated region
        $region49: #{tpu_custom_call.1} parent=35 // pred_check
          %p247 = pneg %p246
        $region50: #{tpu_custom_call.1} parent=35 // pred_check_branch
          %249 = sbr.rel (%p247) target = $region52
        $region51: #{tpu_custom_call.1} parent=35 // pred_region
          %v250 = vld [vmem:[#allocation6] sm:$0xf]
          %v251 = vld [vmem:[#allocation6 + $0x4] sm:$0xf]
          %v252 = vld [vmem:[#allocation6 + $0x8] sm:$0xf]
          %v253 = vld [vmem:[#allocation6 + $0xc] sm:$0xf]
          %v254 = vld [vmem:[#allocation6 + $0x10] sm:$0xf]
          %v255 = vld [vmem:[#allocation6 + $0x14] sm:$0xf]
          %v256 = vld [vmem:[#allocation6 + $0x18] sm:$0xf]
          %v257 = vld [vmem:[#allocation6 + $0x1c] sm:$0xf]
          %v258 = vld [vmem:[#allocation6 + $0x20] sm:$0xf]
          %v259 = vld [vmem:[#allocation6 + $0x24] sm:$0xf]
          %v260 = vld [vmem:[#allocation6 + $0x28] sm:$0xf]
          %v261 = vld [vmem:[#allocation6 + $0x2c] sm:$0xf]
          %v262 = vld [vmem:[#allocation6 + $0x30] sm:$0xf]
          %v263 = vld [vmem:[#allocation6 + $0x34] sm:$0xf]
          %v264 = vld [vmem:[#allocation6 + $0x38] sm:$0xf]
          %v265 = vld [vmem:[#allocation6 + $0x3c] sm:$0xf]
          %v282 = vunpack.c.l.b16 %v250
          %v283 = vunpack.c.l.b16 %v251
          %v284 = vunpack.c.l.b16 %v252
          %v285 = vunpack.c.l.b16 %v253
          %v286 = vunpack.c.l.b16 %v254
          %v287 = vunpack.c.l.b16 %v255
          %v288 = vunpack.c.l.b16 %v256
          %v289 = vunpack.c.l.b16 %v257
          %v290 = vunpack.c.l.b16 %v258
          %v291 = vunpack.c.l.b16 %v259
          %v292 = vunpack.c.l.b16 %v260
          %v293 = vunpack.c.l.b16 %v261
          %v294 = vunpack.c.l.b16 %v262
          %v295 = vunpack.c.l.b16 %v263
          %v296 = vunpack.c.l.b16 %v264
          %v297 = vunpack.c.l.b16 %v265
          %v298 = vpack.c.b16 %v283, %v282
          %v299 = vpack.c.b16 %v285, %v284
          %v300 = vpack.c.b16 %v287, %v286
          %v301 = vpack.c.b16 %v289, %v288
          %v302 = vpack.c.b16 %v291, %v290
          %v303 = vpack.c.b16 %v293, %v292
          %v304 = vpack.c.b16 %v295, %v294
          %v305 = vpack.c.b16 %v297, %v296
          %314 = vst [vmem:[#allocation2] sm:$0xff] %v298
          %315 = vst [vmem:[#allocation2 + $0x8] sm:$0xff] %v299
          %316 = vst [vmem:[#allocation2 + $0x10] sm:$0xff] %v300
          %317 = vst [vmem:[#allocation2 + $0x18] sm:$0xff] %v301
          %318 = vst [vmem:[#allocation2 + $0x20] sm:$0xff] %v302
          %319 = vst [vmem:[#allocation2 + $0x28] sm:$0xff] %v303
          %320 = vst [vmem:[#allocation2 + $0x30] sm:$0xff] %v304
          %321 = vst [vmem:[#allocation2 + $0x38] sm:$0xff] %v305
        $region52: #{tpu_custom_call.1} parent=35 // pred_fallthru
          _
        %v322 = vld [vmem:[#allocation3] sm:$0xf]
        %v323 = vld [vmem:[#allocation3 + $0x4] sm:$0xf]
        %v324 = vld [vmem:[#allocation3 + $0x8] sm:$0xf]
        %v325 = vld [vmem:[#allocation3 + $0xc] sm:$0xf]
        %v326 = vld [vmem:[#allocation3 + $0x10] sm:$0xf]
        %v327 = vld [vmem:[#allocation3 + $0x14] sm:$0xf]
        %v328 = vld [vmem:[#allocation3 + $0x18] sm:$0xf]
        %v329 = vld [vmem:[#allocation3 + $0x1c] sm:$0xf]
        %v330 = vld [vmem:[#allocation3 + $0x20] sm:$0xf]
        %v331 = vld [vmem:[#allocation3 + $0x24] sm:$0xf]
        %v332 = vld [vmem:[#allocation3 + $0x28] sm:$0xf]
        %v333 = vld [vmem:[#allocation3 + $0x2c] sm:$0xf]
        %v334 = vld [vmem:[#allocation3 + $0x30] sm:$0xf]
        %v335 = vld [vmem:[#allocation3 + $0x34] sm:$0xf]
        %v336 = vld [vmem:[#allocation3 + $0x38] sm:$0xf]
        %v337 = vld [vmem:[#allocation3 + $0x3c] sm:$0xf]
        %v338 = vld [vmem:[#allocation2] sm:$0xff]
        %v339 = vld [vmem:[#allocation2 + $0x8] sm:$0xff]
        %v340 = vld [vmem:[#allocation2 + $0x10] sm:$0xff]
        %v341 = vld [vmem:[#allocation2 + $0x18] sm:$0xff]
        %v342 = vld [vmem:[#allocation2 + $0x20] sm:$0xff]
        %v343 = vld [vmem:[#allocation2 + $0x28] sm:$0xff]
        %v344 = vld [vmem:[#allocation2 + $0x30] sm:$0xff]
        %v345 = vld [vmem:[#allocation2 + $0x38] sm:$0xff]
        %v362 = vunpack.c.l.b16 %v322
        %v363 = vunpack.c.l.b16 %v323
        %v364 = vunpack.c.l.b16 %v324
        %v365 = vunpack.c.l.b16 %v325
        %v366 = vunpack.c.l.b16 %v326
        %v367 = vunpack.c.l.b16 %v327
        %v368 = vunpack.c.l.b16 %v328
        %v369 = vunpack.c.l.b16 %v329
        %v370 = vunpack.c.l.b16 %v330
        %v371 = vunpack.c.l.b16 %v331
        %v372 = vunpack.c.l.b16 %v332
        %v373 = vunpack.c.l.b16 %v333
        %v374 = vunpack.c.l.b16 %v334
        %v375 = vunpack.c.l.b16 %v335
        %v376 = vunpack.c.l.b16 %v336
        %v377 = vunpack.c.l.b16 %v337
        %v378 = vpack.c.b16 %v363, %v362
        %v379 = vpack.c.b16 %v365, %v364
        %v380 = vpack.c.b16 %v367, %v366
        %v381 = vpack.c.b16 %v369, %v368
        %v382 = vpack.c.b16 %v371, %v370
        %v383 = vpack.c.b16 %v373, %v372
        %v384 = vpack.c.b16 %v375, %v374
        %v385 = vpack.c.b16 %v377, %v376
        %394 = vmatprep.subr.bf16.mxu0 0
        %395 = vmatpush1.bf16.msra.mxu0 %v338
        %396 = vmatprep.subr.bf16.mxu0 0
        %397 = vmatpush1.bf16.msra.mxu0 %v339
        %398 = vmatprep.subr.bf16.mxu0 0
        %399 = vmatpush1.bf16.msra.mxu0 %v340
        %400 = vmatprep.subr.bf16.mxu0 0
        %401 = vmatpush1.bf16.msra.mxu0 %v341
        %402 = vmatprep.subr.bf16.mxu0 0
        %403 = vmatpush1.bf16.msra.mxu0 %v342
        %404 = vmatprep.subr.bf16.mxu0 0
        %405 = vmatpush1.bf16.msra.mxu0 %v343
        %406 = vmatprep.subr.bf16.mxu0 0
        %407 = vmatpush1.bf16.msra.mxu0 %v344
        %408 = vmatprep.subr.bf16.mxu0 0
        %409 = vmatpush1.bf16.msra.mxu0 %v345
        %410 = vmatprep.subr.bf16.mxu0 0
        %411 = vmatpush1.bf16.msra.mxu0 0
        %412 = vmatprep.subr.bf16.mxu0 0
        %413 = vmatpush1.bf16.msra.mxu0 0
        %414 = vmatprep.subr.bf16.mxu0 0
        %415 = vmatpush1.bf16.msra.mxu0 0
        %416 = vmatprep.subr.bf16.mxu0 0
        %417 = vmatpush1.bf16.msra.mxu0 0
        %418 = vmatprep.subr.bf16.mxu0 0
        %419 = vmatpush1.bf16.msra.mxu0 0
        %420 = vmatprep.subr.bf16.mxu0 0
        %421 = vmatpush1.bf16.msra.mxu0 0
        %422 = vmatprep.subr.bf16.mxu0 0
        %423 = vmatpush1.bf16.msra.mxu0 0
        %424 = vmatprep.subr.bf16.mxu0 0
        %425 = vmatpush1.bf16.msra.mxu0 0
        %426 = vmatprep.mubr.bf16.mxu0 0
        %427 = vmatmul.mubr.bf16.gmra.mrb[0].mxu0 %v378
        %v428 = vpop.f32.mrb[0].mxu0
        %v429 = vadd.f32 0.0, %v428
        %v430 = vpop.f32.mrb[0].mxu0
        %v431 = vpop.f32.mrb[0].mxu0
        %v432 = vadd.f32 0.0, %v431
        %v433 = vpop.f32.mrb[0].mxu0
        %434 = vmatprep.mubr.bf16.mxu0 0
        %435 = vmatmul.mubr.bf16.gmra.mrb[0].mxu0 %v379
        %v436 = vpop.f32.mrb[0].mxu0
        %v437 = vadd.f32 0.0, %v436
        %v438 = vpop.f32.mrb[0].mxu0
        %v439 = vpop.f32.mrb[0].mxu0
        %v440 = vadd.f32 0.0, %v439
        %v441 = vpop.f32.mrb[0].mxu0
        %442 = vmatprep.mubr.bf16.mxu0 0
        %443 = vmatmul.mubr.bf16.gmra.mrb[0].mxu0 %v380
        %v444 = vpop.f32.mrb[0].mxu0
        %v445 = vadd.f32 0.0, %v444
        %v446 = vpop.f32.mrb[0].mxu0
        %v447 = vpop.f32.mrb[0].mxu0
        %v448 = vadd.f32 0.0, %v447
        %v449 = vpop.f32.mrb[0].mxu0
        %450 = vmatprep.mubr.bf16.mxu0 0
        %451 = vmatmul.mubr.bf16.gmra.mrb[0].mxu0 %v381
        %v452 = vpop.f32.mrb[0].mxu0
        %v453 = vadd.f32 0.0, %v452
        %v454 = vpop.f32.mrb[0].mxu0
        %v455 = vpop.f32.mrb[0].mxu0
        %v456 = vadd.f32 0.0, %v455
        %v457 = vpop.f32.mrb[0].mxu0
        %458 = vmatprep.mubr.bf16.mxu0 0
        %459 = vmatmul.mubr.bf16.gmra.mrb[0].mxu0 %v382
        %v460 = vpop.f32.mrb[0].mxu0
        %v461 = vadd.f32 0.0, %v460
        %v462 = vpop.f32.mrb[0].mxu0
        %v463 = vpop.f32.mrb[0].mxu0
        %v464 = vadd.f32 0.0, %v463
        %v465 = vpop.f32.mrb[0].mxu0
        %466 = vmatprep.mubr.bf16.mxu0 0
        %467 = vmatmul.mubr.bf16.gmra.mrb[0].mxu0 %v383
        %v468 = vpop.f32.mrb[0].mxu0
        %v469 = vadd.f32 0.0, %v468
        %v470 = vpop.f32.mrb[0].mxu0
        %v471 = vpop.f32.mrb[0].mxu0
        %v472 = vadd.f32 0.0, %v471
        %v473 = vpop.f32.mrb[0].mxu0
        %474 = vmatprep.mubr.bf16.mxu0 0
        %475 = vmatmul.mubr.bf16.gmra.mrb[0].mxu0 %v384
        %v476 = vpop.f32.mrb[0].mxu0
        %v477 = vadd.f32 0.0, %v476
        %v478 = vpop.f32.mrb[0].mxu0
        %v479 = vpop.f32.mrb[0].mxu0
        %v480 = vadd.f32 0.0, %v479
        %v481 = vpop.f32.mrb[0].mxu0
        %482 = vmatprep.mubr.bf16.mxu0 0
        %483 = vmatmul.mubr.bf16.gmra.mrb[0].mxu0 %v385
        %v484 = vpop.f32.mrb[0].mxu0
        %v485 = vadd.f32 0.0, %v484
        %v486 = vpop.f32.mrb[0].mxu0
        %v487 = vpop.f32.mrb[0].mxu0
        %v488 = vadd.f32 0.0, %v487
        %v489 = vpop.f32.mrb[0].mxu0
        %490 = vdwg.mxu0
        %v491 = vpack.c.bf16 %v432, %v429
        %v492 = vpack.c.bf16 %v440, %v437
        %v493 = vpack.c.bf16 %v448, %v445
        %v494 = vpack.c.bf16 %v456, %v453
        %v495 = vpack.c.bf16 %v464, %v461
        %v496 = vpack.c.bf16 %v472, %v469
        %v497 = vpack.c.bf16 %v480, %v477
        %v498 = vpack.c.bf16 %v488, %v485
        %v499 = vld [vmem:[%s219] sm:$0xf]
        %v500 = vld [vmem:[%s219 + $0x4] sm:$0xf]
        %v501 = vld [vmem:[%s219 + $0x8] sm:$0xf]
        %v502 = vld [vmem:[%s219 + $0xc] sm:$0xf]
        %v503 = vld [vmem:[%s219 + $0x10] sm:$0xf]
        %v504 = vld [vmem:[%s219 + $0x14] sm:$0xf]
        %v505 = vld [vmem:[%s219 + $0x18] sm:$0xf]
        %v506 = vld [vmem:[%s219 + $0x1c] sm:$0xf]
        %v507 = vld [vmem:[%s219 + $0x20] sm:$0xf]
        %v508 = vld [vmem:[%s219 + $0x24] sm:$0xf]
        %v509 = vld [vmem:[%s219 + $0x28] sm:$0xf]
        %v510 = vld [vmem:[%s219 + $0x2c] sm:$0xf]
        %v511 = vld [vmem:[%s219 + $0x30] sm:$0xf]
        %v512 = vld [vmem:[%s219 + $0x34] sm:$0xf]
        %v513 = vld [vmem:[%s219 + $0x38] sm:$0xf]
        %v514 = vld [vmem:[%s219 + $0x3c] sm:$0xf]
        %v515 = vld [vmem:[%s219 + $0x40] sm:$0xf]
        %v516 = vld [vmem:[%s219 + $0x44] sm:$0xf]
        %v517 = vld [vmem:[%s219 + $0x48] sm:$0xf]
        %v518 = vld [vmem:[%s219 + $0x4c] sm:$0xf]
        %v519 = vld [vmem:[%s219 + $0x50] sm:$0xf]
        %v520 = vld [vmem:[%s219 + $0x54] sm:$0xf]
        %v521 = vld [vmem:[%s219 + $0x58] sm:$0xf]
        %v522 = vld [vmem:[%s219 + $0x5c] sm:$0xf]
        %v523 = vld [vmem:[%s219 + $0x60] sm:$0xf]
        %v524 = vld [vmem:[%s219 + $0x64] sm:$0xf]
        %v525 = vld [vmem:[%s219 + $0x68] sm:$0xf]
        %v526 = vld [vmem:[%s219 + $0x6c] sm:$0xf]
        %v527 = vld [vmem:[%s219 + $0x70] sm:$0xf]
        %v528 = vld [vmem:[%s219 + $0x74] sm:$0xf]
        %v529 = vld [vmem:[%s219 + $0x78] sm:$0xf]
        %v530 = vld [vmem:[%s219 + $0x7c] sm:$0xf]
        %v531 = vld [vmem:[%s244] sm:$0x1]
        %v533 = vlaneseq
        %v534 = vshrl.u32 %v533, 7
        %v535 = vsub.s32 0, %v534
        %v536 = vrot.slane %v531, %v535
        %v570 = vunpack.c.l.b16 %v499
        %v571 = vunpack.c.l.b16 %v500
        %v572 = vunpack.c.l.b16 %v501
        %v573 = vunpack.c.l.b16 %v502
        %v574 = vunpack.c.l.b16 %v503
        %v575 = vunpack.c.l.b16 %v504
        %v576 = vunpack.c.l.b16 %v505
        %v577 = vunpack.c.l.b16 %v506
        %v578 = vunpack.c.l.b16 %v507
        %v579 = vunpack.c.l.b16 %v508
        %v580 = vunpack.c.l.b16 %v509
        %v581 = vunpack.c.l.b16 %v510
        %v582 = vunpack.c.l.b16 %v511
        %v583 = vunpack.c.l.b16 %v512
        %v584 = vunpack.c.l.b16 %v513
        %v585 = vunpack.c.l.b16 %v514
        %v586 = vunpack.c.l.b16 %v515
        %v587 = vunpack.c.l.b16 %v516
        %v588 = vunpack.c.l.b16 %v517
        %v589 = vunpack.c.l.b16 %v518
        %v590 = vunpack.c.l.b16 %v519
        %v591 = vunpack.c.l.b16 %v520
        %v592 = vunpack.c.l.b16 %v521
        %v593 = vunpack.c.l.b16 %v522
        %v594 = vunpack.c.l.b16 %v523
        %v595 = vunpack.c.l.b16 %v524
        %v596 = vunpack.c.l.b16 %v525
        %v597 = vunpack.c.l.b16 %v526
        %v598 = vunpack.c.l.b16 %v527
        %v599 = vunpack.c.l.b16 %v528
        %v600 = vunpack.c.l.b16 %v529
        %v601 = vunpack.c.l.b16 %v530
        %v602 = vpack.c.b16 %v571, %v570
        %v603 = vpack.c.b16 %v573, %v572
        %v604 = vpack.c.b16 %v575, %v574
        %v605 = vpack.c.b16 %v577, %v576
        %v606 = vpack.c.b16 %v579, %v578
        %v607 = vpack.c.b16 %v581, %v580
        %v608 = vpack.c.b16 %v583, %v582
        %v609 = vpack.c.b16 %v585, %v584
        %v610 = vpack.c.b16 %v587, %v586
        %v611 = vpack.c.b16 %v589, %v588
        %v612 = vpack.c.b16 %v591, %v590
        %v613 = vpack.c.b16 %v593, %v592
        %v614 = vpack.c.b16 %v595, %v594
        %v615 = vpack.c.b16 %v597, %v596
        %v616 = vpack.c.b16 %v599, %v598
        %v617 = vpack.c.b16 %v601, %v600
        %634 = vmatprep.subr.bf16.mxu0 0
        %635 = vmatpush1.bf16.msra.mxu0 %v602
        %636 = vmatprep.subr.bf16.mxu0 0
        %637 = vmatpush1.bf16.msra.mxu0 %v603
        %638 = vmatprep.subr.bf16.mxu0 0
        %639 = vmatpush1.bf16.msra.mxu0 %v604
        %640 = vmatprep.subr.bf16.mxu0 0
        %641 = vmatpush1.bf16.msra.mxu0 %v605
        %642 = vmatprep.subr.bf16.mxu0 0
        %643 = vmatpush1.bf16.msra.mxu0 %v606
        %644 = vmatprep.subr.bf16.mxu0 0
        %645 = vmatpush1.bf16.msra.mxu0 %v607
        %646 = vmatprep.subr.bf16.mxu0 0
        %647 = vmatpush1.bf16.msra.mxu0 %v608
        %648 = vmatprep.subr.bf16.mxu0 0
        %649 = vmatpush1.bf16.msra.mxu0 %v609
        %650 = vmatprep.subr.bf16.mxu0 0
        %651 = vmatpush1.bf16.msra.mxu0 %v610
        %652 = vmatprep.subr.bf16.mxu0 0
        %653 = vmatpush1.bf16.msra.mxu0 %v611
        %654 = vmatprep.subr.bf16.mxu0 0
        %655 = vmatpush1.bf16.msra.mxu0 %v612
        %656 = vmatprep.subr.bf16.mxu0 0
        %657 = vmatpush1.bf16.msra.mxu0 %v613
        %658 = vmatprep.subr.bf16.mxu0 0
        %659 = vmatpush1.bf16.msra.mxu0 %v614
        %660 = vmatprep.subr.bf16.mxu0 0
        %661 = vmatpush1.bf16.msra.mxu0 %v615
        %662 = vmatprep.subr.bf16.mxu0 0
        %663 = vmatpush1.bf16.msra.mxu0 %v616
        %664 = vmatprep.subr.bf16.mxu0 0
        %665 = vmatpush1.bf16.msra.mxu0 %v617
        %666 = vmatprep.mubr.bf16.mxu0 %v338
        %667 = vmatmul.mubr.bf16.gmra.mrb[0].mxu0 %v491
        %v668 = vpop.f32.mrb[0].mxu0
        %v669 = vadd.f32 %v536, %v668
        %v670 = vpop.f32.mrb[0].mxu0
        %v671 = vpop.f32.mrb[0].mxu0
        %v672 = vadd.f32 %v536, %v671
        %v673 = vpop.f32.mrb[0].mxu0
        %674 = vmatprep.mubr.bf16.mxu0 %v339
        %675 = vmatmul.mubr.bf16.gmra.mrb[0].mxu0 %v492
        %v676 = vpop.f32.mrb[0].mxu0
        %v677 = vadd.f32 %v536, %v676
        %v678 = vpop.f32.mrb[0].mxu0
        %v679 = vpop.f32.mrb[0].mxu0
        %v680 = vadd.f32 %v536, %v679
        %v681 = vpop.f32.mrb[0].mxu0
        %682 = vmatprep.mubr.bf16.mxu0 %v340
        %683 = vmatmul.mubr.bf16.gmra.mrb[0].mxu0 %v493
        %v684 = vpop.f32.mrb[0].mxu0
        %v685 = vadd.f32 %v536, %v684
        %v686 = vpop.f32.mrb[0].mxu0
        %v687 = vpop.f32.mrb[0].mxu0
        %v688 = vadd.f32 %v536, %v687
        %v689 = vpop.f32.mrb[0].mxu0
        %690 = vmatprep.mubr.bf16.mxu0 %v341
        %691 = vmatmul.mubr.bf16.gmra.mrb[0].mxu0 %v494
        %v692 = vpop.f32.mrb[0].mxu0
        %v693 = vadd.f32 %v536, %v692
        %v694 = vpop.f32.mrb[0].mxu0
        %v695 = vpop.f32.mrb[0].mxu0
        %v696 = vadd.f32 %v536, %v695
        %v697 = vpop.f32.mrb[0].mxu0
        %698 = vmatprep.mubr.bf16.mxu0 %v342
        %699 = vmatmul.mubr.bf16.gmra.mrb[0].mxu0 %v495
        %v700 = vpop.f32.mrb[0].mxu0
        %v701 = vadd.f32 %v536, %v700
        %v702 = vpop.f32.mrb[0].mxu0
        %v703 = vpop.f32.mrb[0].mxu0
        %v704 = vadd.f32 %v536, %v703
        %v705 = vpop.f32.mrb[0].mxu0
        %706 = vmatprep.mubr.bf16.mxu0 %v343
        %707 = vmatmul.mubr.bf16.gmra.mrb[0].mxu0 %v496
        %v708 = vpop.f32.mrb[0].mxu0
        %v709 = vadd.f32 %v536, %v708
        %v710 = vpop.f32.mrb[0].mxu0
        %v711 = vpop.f32.mrb[0].mxu0
        %v712 = vadd.f32 %v536, %v711
        %v713 = vpop.f32.mrb[0].mxu0
        %714 = vmatprep.mubr.bf16.mxu0 %v344
        %715 = vmatmul.mubr.bf16.gmra.mrb[0].mxu0 %v497
        %v716 = vpop.f32.mrb[0].mxu0
        %v717 = vadd.f32 %v536, %v716
        %v718 = vpop.f32.mrb[0].mxu0
        %v719 = vpop.f32.mrb[0].mxu0
        %v720 = vadd.f32 %v536, %v719
        %v721 = vpop.f32.mrb[0].mxu0
        %722 = vmatprep.mubr.bf16.mxu0 %v345
        %723 = vmatmul.mubr.bf16.gmra.mrb[0].mxu0 %v498
        %v724 = vpop.f32.mrb[0].mxu0
        %v725 = vadd.f32 %v536, %v724
        %v726 = vpop.f32.mrb[0].mxu0
        %v727 = vpop.f32.mrb[0].mxu0
        %v728 = vadd.f32 %v536, %v727
        %v729 = vpop.f32.mrb[0].mxu0
        %730 = vdwg.mxu0
        %v731 = vmax.f32 %v669, 0.0
        %v732 = vmax.f32 %v672, 0.0
        %v733 = vmax.f32 %v677, 0.0
        %v734 = vmax.f32 %v680, 0.0
        %v735 = vmax.f32 %v685, 0.0
        %v736 = vmax.f32 %v688, 0.0
        %v737 = vmax.f32 %v693, 0.0
        %v738 = vmax.f32 %v696, 0.0
        %v739 = vmax.f32 %v701, 0.0
        %v740 = vmax.f32 %v704, 0.0
        %v741 = vmax.f32 %v709, 0.0
        %v742 = vmax.f32 %v712, 0.0
        %v743 = vmax.f32 %v717, 0.0
        %v744 = vmax.f32 %v720, 0.0
        %v745 = vmax.f32 %v725, 0.0
        %v746 = vmax.f32 %v728, 0.0
        %v747 = vpack.c.bf16 %v732, %v731
        %v748 = vpack.c.bf16 %v734, %v733
        %v749 = vpack.c.bf16 %v736, %v735
        %v750 = vpack.c.bf16 %v738, %v737
        %v751 = vpack.c.bf16 %v740, %v739
        %v752 = vpack.c.bf16 %v742, %v741
        %v753 = vpack.c.bf16 %v744, %v743
        %v754 = vpack.c.bf16 %v746, %v745
        %755 = vst [vmem:[#allocation2] sm:$0xff] %v747
        %756 = vst [vmem:[#allocation2 + $0x8] sm:$0xff] %v748
        %757 = vst [vmem:[#allocation2 + $0x10] sm:$0xff] %v749
        %758 = vst [vmem:[#allocation2 + $0x18] sm:$0xff] %v750
        %759 = vst [vmem:[#allocation2 + $0x20] sm:$0xff] %v751
        %760 = vst [vmem:[#allocation2 + $0x28] sm:$0xff] %v752
        %761 = vst [vmem:[#allocation2 + $0x30] sm:$0xff] %v753
        %762 = vst [vmem:[#allocation2 + $0x38] sm:$0xff] %v754
        %p763 = scmp.eq.s32.totalorder %s18, 2
        // Predicated region
        $region53: #{tpu_custom_call.1} parent=35 // pred_check
          %p764 = pneg %p763
        $region54: #{tpu_custom_call.1} parent=35 // pred_check_branch
          %766 = sbr.rel (%p764) target = $region56
        $region55: #{tpu_custom_call.1} parent=35 // pred_region
          %767 = vst [vmem:[#allocation9] sm:$0xff] %v669
          %768 = vst [vmem:[#allocation9 + $0x8] sm:$0xff] %v672
          %769 = vst [vmem:[#allocation9 + $0x10] sm:$0xff] %v677
          %770 = vst [vmem:[#allocation9 + $0x18] sm:$0xff] %v680
          %771 = vst [vmem:[#allocation9 + $0x20] sm:$0xff] %v685
          %772 = vst [vmem:[#allocation9 + $0x28] sm:$0xff] %v688
          %773 = vst [vmem:[#allocation9 + $0x30] sm:$0xff] %v693
          %774 = vst [vmem:[#allocation9 + $0x38] sm:$0xff] %v696
          %775 = vst [vmem:[#allocation9 + $0x40] sm:$0xff] %v701
          %776 = vst [vmem:[#allocation9 + $0x48] sm:$0xff] %v704
          %777 = vst [vmem:[#allocation9 + $0x50] sm:$0xff] %v709
          %778 = vst [vmem:[#allocation9 + $0x58] sm:$0xff] %v712
          %779 = vst [vmem:[#allocation9 + $0x60] sm:$0xff] %v717
          %780 = vst [vmem:[#allocation9 + $0x68] sm:$0xff] %v720
          %781 = vst [vmem:[#allocation9 + $0x70] sm:$0xff] %v725
          %782 = vst [vmem:[#allocation9 + $0x78] sm:$0xff] %v728
        $region56: #{tpu_custom_call.1} parent=35 // pred_fallthru
          _
        // Predicated region
        $region57: #{tpu_custom_call.1} parent=35 // pred_check
          %p783 = pneg %p125
        $region58: #{tpu_custom_call.1} parent=35 // pred_check_branch
          %785 = sbr.rel (%p783) target = $region60
        $region59: #{tpu_custom_call.1} parent=35 // pred_region
          %s787 = ssub.s32 2048, 2048
          %788 = vsyncadd [#allocation5], %s787
          %s789 = sshll.u32 [#allocation9], 4
          %s790 = int_to_ptr.vmem [resolvable:$true] %s789
          %795 = dma.vmem_to_hbm [thread:$0]  %s790, 2048, %s4, [#allocation5], 128, 128, 8
        $region60: #{tpu_custom_call.1} parent=35 // pred_fallthru
          _
        // Predicated region
        $region61: #{tpu_custom_call.1} parent=35 // pred_check
          %p796 = pneg %p125
        $region62: #{tpu_custom_call.1} parent=35 // pred_check_branch
          %798 = sbr.rel (%p796) target = $region64
        $region63: #{tpu_custom_call.1} parent=35 // pred_region
          %799 = dma.done [#allocation5], 2048
        $region64: #{tpu_custom_call.1} parent=35 // pred_fallthru
          _
      $region36: #{tpu_custom_call.1} parent=5 // pred_fallthru
        _
      %p800 = scmp.le.s32.totalorder 2, %s13
      // Predicated region
      $region65: #{tpu_custom_call.1} parent=5 // pred_check
        %p801 = pneg %p800
      $region66: #{tpu_custom_call.1} parent=5 // pred_check_branch
        %803 = sbr.rel (%p801) target = $region68
      $region67: #{tpu_custom_call.1} parent=5 // pred_region
        %s804 = ssub.s32 %s13, 2
      $region68: #{tpu_custom_call.1} parent=5 // pred_fallthru
        _
    $region6: #{tpu_custom_call.1} parent=1 // loop_footer
      %s17 = sadd.s32 1, %s13
    $region7: #{tpu_custom_call.1} parent=1 // loop_footer_branch
      %12 = sbr.rel target = $region3
    $region8: #{tpu_custom_call.1} parent=1 // loop_exit
      _
    %805 = vsyncpa [#allocation4], 1
    %s806 = scalar_lea.sflag [#allocation4], 1
    %807 = vsyncpa %s806, 1
    %808 = vsyncpa [#allocation7], 1
    %809 = vsyncpa [#allocation5], 1
    %s810 = scalar_lea.sflag [#allocation5], 1
    %811 = vsyncpa %s810, 1

</llo_original>
